<compile_context>
chip_gen: v5e
topology: v5e:2x2
jax: 0.10.0
libtpu: 0.0.40
codegen_flags: <defaults>
</compile_context>

<pallas_src>
import math

import jax
import jax.numpy as jnp
from jax.experimental import pallas as pl
from jax.experimental.pallas import tpu as pltpu


def _round_up(x: int, m: int) -> int:
    return ((x + m - 1) // m) * m


def _linear_kernel(x_ref, w_ref, b_ref, o_ref):
    """One grid step: (tm, H) @ (H, F) + (1, F) -> (tm, F). Full-H contraction,
    bias folded directly into the single output write."""
    o_ref[...] = (
        jnp.dot(x_ref[...], w_ref[...], preferred_element_type=jnp.float32)
        + b_ref[...].astype(jnp.float32)
    ).astype(o_ref.dtype)


def _pick_tm(batch: int, max_tm: int = 512, min_blocks: int = 2) -> int:
    """Rows of x per grid step.

    `batch` is already a multiple of 8. Prefer large tiles (amortize ~0.35 us
    per-step overhead; an x tile is only tm*H*4 bytes so VMEM is never the
    limit), but keep >= `min_blocks` i-blocks when the batch allows it so the
    two v7x TensorCores can both be given work along the only parallel axis.
    """
    tm = min(max_tm, batch)
    if batch // tm < min_blocks and batch >= 2 * 8:
        tm = _round_up(pl.cdiv(batch, min_blocks), 8)
    return tm


def _pallas_linear(x, w, b, *, max_tm=512, compute_dtype=None, x_buffer_count=2):
    """y = x @ w + b as a single streaming pass over x."""
    B, H = x.shape
    Hw, F = w.shape
    assert Hw == H
    out_dtype = x.dtype

    if compute_dtype is not None:
        # bf16 halves the dominant HBM stream (x); accumulation stays f32.
        x = x.astype(compute_dtype)
        w = w.astype(compute_dtype)

    # Pad the batch only to a sublane multiple (at most 7 dead rows and only
    # when B % 8 != 0); H and F are full-extent block dims and need no padding.
    Bp = _round_up(B, 8)
    xp = x if Bp == B else jnp.pad(x, ((0, Bp - B), (0, 0)))

    tm = _pick_tm(Bp, max_tm=max_tm)
    grid = (pl.cdiv(Bp, tm),)  # ragged last block is masked by Pallas

    in_itemsize = jnp.dtype(xp.dtype).itemsize
    out_itemsize = jnp.dtype(out_dtype).itemsize
    cost = pl.CostEstimate(
        flops=2 * Bp * H * F,
        transcendentals=0,
        bytes_accessed=(Bp * H + H * F + F) * in_itemsize + Bp * F * out_itemsize,
    )

    # VMEM budget derived from the real tile footprint (double/triple buffered
    # x, resident w/b, double-buffered out) with ~2x headroom; this is ~1-3 MiB,
    # far under the 64 MiB per-TC cap on v7x.
    bufs = max(2, x_buffer_count)
    tile_bytes = (bufs * tm * H + 2 * H * F + 2 * F) * in_itemsize \
        + 2 * tm * F * out_itemsize
    vmem_limit = int(min(64 * 1024 * 1024, max(2 * 1024 * 1024, 2 * tile_bytes)))

    if x_buffer_count > 2:
        x_spec = pl.BlockSpec((tm, H), lambda i: (i, 0),
                              pipeline_mode=pl.Buffered(x_buffer_count))
    else:
        x_spec = pl.BlockSpec((tm, H), lambda i: (i, 0))

    out = pl.pallas_call(
        _linear_kernel,
        out_shape=jax.ShapeDtypeStruct((Bp, F), out_dtype),
        grid_spec=pltpu.PrefetchScalarGridSpec(
            num_scalar_prefetch=0,
            grid=grid,
            in_specs=[
                x_spec,                                   # x rows stream through
                pl.BlockSpec((H, F), lambda i: (0, 0)),   # weight, VMEM-resident
                pl.BlockSpec((1, F), lambda i: (0, 0)),   # bias, VMEM-resident
            ],
            out_specs=pl.BlockSpec((tm, F), lambda i: (i, 0)),
        ),
        compiler_params=pltpu.CompilerParams(
            dimension_semantics=("parallel",),  # i-blocks are independent
            vmem_limit_bytes=vmem_limit,
        ),
        cost_estimate=cost,
    )(xp, w, b)

    return out if Bp == B else out[:B]


def output_adapter_forward(
    x,
    w,
    b,
    *,
    output_channels: int,
    n_outputs: int,
    min_pallas_input_bytes: int = 256 * 1024,
    force_pallas: bool = False,
    compute_dtype=None,
):
    """OutputAdapter.forward: Linear(H -> C*n) then reshape to (B, C, n)."""
    B, H = x.shape
    F = w.shape[1]
    assert F == output_channels * n_outputs

    # Dispatch on the dominant stream (B*H input bytes), not B*F outputs.
    input_bytes = B * H * jnp.dtype(x.dtype).itemsize
    use_pallas = force_pallas or (input_bytes >= min_pallas_input_bytes)
    if use_pallas:
        out = _pallas_linear(x, w, b, compute_dtype=compute_dtype)
    else:
        # Tiny problems: a pallas_call launch + DMA setup costs far more than
        # the handful of MACs; XLA's fused dot is strictly faster.
        out = x @ w + b

    # reshape(output.size(0), -1, n_outputs) -- layout glue, not kernel work.
    return out.reshape(B, -1, n_outputs)


def init_params(key, network_height: int, out_features: int):
    """Deterministic init mimicking nn.Linear's default uniform init."""
    kw, kb = jax.random.split(key)
    bound = 1.0 / math.sqrt(network_height)
    # PyTorch stores weight as (out, in); we keep (in, out) so the kernel does x @ w.
    w = jax.random.uniform(
        kw, (network_height, out_features), jnp.float32, -bound, bound
    )
    b = jax.random.uniform(kb, (1, out_features), jnp.float32, -bound, bound)
    return w, b


if __name__ == "__main__":
    key = jax.random.PRNGKey(0)
    output_channels, n_outputs = 3, 2        # (r, g, b) x (mean, std)
    out_features = output_channels * n_outputs

    # --- 1) Module-consistent small shapes: takes the plain-JAX fallback. ---
    batch, network_height = 8, 32
    k1, k2, key = jax.random.split(key, 3)
    x_small = jax.random.normal(k1, (batch, network_height), jnp.float32)
    w_s, b_s = init_params(k2, network_height, out_features)
    ref_small = (x_small @ w_s + b_s).reshape(batch, -1, n_outputs)

    y_small = output_adapter_forward(
        x_small, w_s, b_s, output_channels=output_channels, n_outputs=n_outputs
    )
    jax.block_until_ready(y_small)
    assert y_small.shape == (batch, output_channels, n_outputs), y_small.shape
    assert jnp.allclose(y_small, ref_small, atol=1e-5, rtol=1e-5)

    # --- 2) Same small shape forced through the Pallas path (single block). ---
    y_small_pl = output_adapter_forward(
        x_small, w_s, b_s,
        output_channels=output_channels, n_outputs=n_outputs, force_pallas=True,
    )
    jax.block_until_ready(y_small_pl)
    assert y_small_pl.shape == (batch, output_channels, n_outputs)
    assert jnp.allclose(y_small_pl, ref_small, atol=1e-5, rtol=1e-5)

    # --- 3) Module-default H=160 at a larger batch: 2 i-blocks (v7x-friendly),
    #        no H/F padding, no batch pad copy. ---
    batch_l, network_height_l = 384, 160
    k3, k4 = jax.random.split(key)
    x_large = jax.random.normal(k3, (batch_l, network_height_l), jnp.float32)
    w_l, b_l = init_params(k4, network_height_l, out_features)
    ref_large = (x_large @ w_l + b_l).reshape(batch_l, -1, n_outputs)

    y_large = output_adapter_forward(
        x_large, w_l, b_l,
        output_channels=output_channels, n_outputs=n_outputs, force_pallas=True,
    )
    jax.block_until_ready(y_large)
    assert y_large.shape == (batch_l, output_channels, n_outputs), y_large.shape
    assert jnp.allclose(y_large, ref_large, atol=1e-4, rtol=1e-4)

    # --- 4) Optional bf16 input path (halves the dominant HBM stream). ---
    y_bf16 = output_adapter_forward(
        x_large, w_l, b_l,
        output_channels=output_channels, n_outputs=n_outputs,
        force_pallas=True, compute_dtype=jnp.bfloat16,
    )
    jax.block_until_ready(y_bf16)
    assert y_bf16.shape == (batch_l, output_channels, n_outputs)
    assert jnp.allclose(y_bf16, ref_large, atol=5e-2, rtol=5e-2)

    print("KERNEL_OK")
</pallas_src>

<mosaic_0001>
module attributes {stable_mosaic.version = 11 : i64} {
  func.func @_linear_kernel(%arg0: i32, %arg1: memref<8x32xf32, #tpu.memory_space<vmem>>, %arg2: memref<32x6xf32, #tpu.memory_space<vmem>>, %arg3: memref<1x6xf32, #tpu.memory_space<vmem>>, %arg4: memref<8x6xf32, #tpu.memory_space<vmem>>) attributes {dimension_semantics = [#tpu.dimension_semantics<parallel>], iteration_bounds = array<i64: 1>, scalar_prefetch = 0 : i64, scratch_operands = 0 : i64, tpu.core_type = #tpu.core_type<tc>, window_params = [{transform_indices = @transform_0, window_bounds = array<i64: 8, 32>}, {pipeline_mode = #tpu.pipeline_mode<synchronous>, transform_indices = @transform_1, window_bounds = array<i64: 32, 6>}, {pipeline_mode = #tpu.pipeline_mode<synchronous>, transform_indices = @transform_2, window_bounds = array<i64: 1, 6>}, {transform_indices = @transform_3, window_bounds = array<i64: 8, 6>}]} {
    %c0 = arith.constant 0 : index
    %c0_0 = arith.constant 0 : index
    %0 = vector.load %arg1[%c0, %c0_0] : memref<8x32xf32, #tpu.memory_space<vmem>>, vector<8x32xf32>
    %c0_1 = arith.constant 0 : index
    %c0_2 = arith.constant 0 : index
    %1 = vector.load %arg2[%c0_1, %c0_2] : memref<32x6xf32, #tpu.memory_space<vmem>>, vector<32x6xf32>
    %cst = arith.constant dense<0.000000e+00> : vector<8x6xf32>
    %2 = tpu.matmul %0, %1, %cst {dimension_numbers = #tpu.dot_dimension_numbers<[1], [0], [0], [1], [0, 0, 1, 1], [], []>} : vector<8x32xf32>, vector<32x6xf32>, vector<8x6xf32> -> vector<8x6xf32>
    %c0_3 = arith.constant 0 : index
    %c0_4 = arith.constant 0 : index
    %3 = vector.load %arg3[%c0_3, %c0_4] : memref<1x6xf32, #tpu.memory_space<vmem>>, vector<1x6xf32>
    %4 = vector.broadcast %3 : vector<1x6xf32> to vector<8x6xf32>
    %5 = arith.addf %2, %4 : vector<8x6xf32>
    %c0_5 = arith.constant 0 : index
    %c0_6 = arith.constant 0 : index
    %6 = vector.load %arg4[%c0_5, %c0_6] : memref<8x6xf32, #tpu.memory_space<vmem>>, vector<8x6xf32>
    tpu.vector_store %arg4[%c0_5, %c0_6], %5 {strides = array<i32>} : memref<8x6xf32, #tpu.memory_space<vmem>>, vector<8x6xf32>,
    return
  }
  func.func @transform_0(%arg0: i32) -> (i32, i32) {
    %c0_i32 = arith.constant 0 : i32
    %c0_i32_0 = arith.constant 0 : i32
    return %arg0, %c0_i32 : i32, i32
  }
  func.func @transform_1(%arg0: i32) -> (i32, i32) {
    %c0_i32 = arith.constant 0 : i32
    %c0_i32_0 = arith.constant 0 : i32
    %c0_i32_1 = arith.constant 0 : i32
    return %c0_i32, %c0_i32_0 : i32, i32
  }
  func.func @transform_2(%arg0: i32) -> (i32, i32) {
    %c0_i32 = arith.constant 0 : i32
    %c0_i32_0 = arith.constant 0 : i32
    %c0_i32_1 = arith.constant 0 : i32
    return %c0_i32, %c0_i32_0 : i32, i32
  }
  func.func @transform_3(%arg0: i32) -> (i32, i32) {
    %c0_i32 = arith.constant 0 : i32
    %c0_i32_0 = arith.constant 0 : i32
    return %arg0, %c0_i32 : i32, i32
  }
}

</mosaic_0001>

<llo_original>
// kernel: tpu_custom_call.1
$region0: #{tpu_custom_call.1}
  #allocation0 [shape = 'u32[]', space=smem, size = 0x4, offset = 0x4, fixed_abs, tag = 'smem constant byte address 0x4 - core index']
  #allocation1 [shape = 'u32[72,128]{1,0:T(1,128)}', space=vmem, size = 0x9000, scoped, tag = 'internal scratch']
  %s0 = inlined_call_operand.vmem [shape: f32[8,32], index: 0, kind: input, shape index: {}]
  %s1 = inlined_call_operand.vmem [shape: f32[32,6], index: 1, kind: input, shape index: {}]
  %s2 = inlined_call_operand.vmem [shape: f32[1,6], index: 2, kind: input, shape index: {}]
  %s3 = inlined_call_operand.hbm [shape: f32[8,6], index: 3, kind: output, shape index: {}]
  %s4 = sld [smem:[#allocation0]]
  $region22: #{tpu_custom_call.1} parent=0
    _
  %s6 = ssub.s32 1, %s4
  %s7 = scalar_select 0, %s6, %s4
  $region1: #{tpu_custom_call.1} parent=0
    #allocation2 [shape = 'u8[4096]{0}', space=vmem, size = 0x1000, scoped, tag = 'output window, operand 0, single buffered']
    #allocation3 [shape = 's32[1]{0}', space=sflag, size = 0x4, scoped, tag = 'scoped memory for tpu_custom_call.1']
    %8 = vsyncpa [#allocation3], 0
    // Predicated region
    $region2: #{tpu_custom_call.1} parent=1 // pred_check
      _
    $region3: #{tpu_custom_call.1} parent=1 // pred_check_branch
      %10 = sbr.rel (0) target = $region5
    $region4: #{tpu_custom_call.1} parent=1 // pred_region
      _
    $region5: #{tpu_custom_call.1} parent=1 // pred_fallthru
      _
    // Predicated region
    $region6: #{tpu_custom_call.1} parent=1 // pred_check
      _
    $region7: #{tpu_custom_call.1} parent=1 // pred_check_branch
      %12 = sbr.rel (0) target = $region9
    $region8: #{tpu_custom_call.1} parent=1 // pred_region
      _
    $region9: #{tpu_custom_call.1} parent=1 // pred_fallthru
      _
    // Predicated region
    $region10: #{tpu_custom_call.1} parent=1 // pred_check
      _
    $region11: #{tpu_custom_call.1} parent=1 // pred_check_branch
      %14 = sbr.rel (0) target = $region13
    $region12: #{tpu_custom_call.1} parent=1 // pred_region
      _
    $region13: #{tpu_custom_call.1} parent=1 // pred_fallthru
      _
    %v15 = vld [vmem:[%s0] sm:$0xff]
    %v16 = vld [vmem:[%s1] sm:$0xff]
    %v17 = vld [vmem:[%s1 + $0x8] sm:$0xff]
    %v18 = vld [vmem:[%s1 + $0x10] sm:$0xff]
    %v19 = vld [vmem:[%s1 + $0x18] sm:$0xff]
    %v20 = vld [vmem:[%s2] sm:$0x1]
    %v22 = vperm.slane %v20, 0
    %vm24 = vcmask 261120
    %v26 = vsel %vm24, %v15, 0
    %28 = vmatpush.msra.mxu0 0.0
    %29 = vmatpush.msra.mxu0 0.0
    %30 = vmatpush.msra.mxu0 0.0
    %31 = vmatpush.msra.mxu0 0.0
    %32 = vmatpush.msra.mxu0 0.0
    %33 = vmatpush.msra.mxu0 0.0
    %34 = vmatpush.msra.mxu0 0.0
    %35 = vmatpush.msra.mxu0 0.0
    %36 = vmatpush.msra.mxu0 0.0
    %37 = vmatpush.msra.mxu0 0.0
    %38 = vmatpush.msra.mxu0 0.0
    %39 = vmatpush.msra.mxu0 0.0
    %40 = vmatpush.msra.mxu0 %v19
    %41 = vmatpush.msra.mxu0 %v18
    %42 = vmatpush.msra.mxu0 %v17
    %43 = vmatpush.msra.mxu0 %v16
    %44 = vmatmul.f32.gmra.mxu0 %v26
    %v45 = vpop.f32.mrf.mxu0
    %v46 = vadd.f32 %v22, %v45
    %47 = vdwg.mxu0
    %vm48 = vcmask 48128
    %49 = vst.msk [vmem:[#allocation2] sm:$0xff] %vm48, %v46
    // Predicated region
    $region14: #{tpu_custom_call.1} parent=1 // pred_check
      _
    $region15: #{tpu_custom_call.1} parent=1 // pred_check_branch
      %51 = sbr.rel (0) target = $region17
    $region16: #{tpu_custom_call.1} parent=1 // pred_region
      %53 = vsyncadd [#allocation3], 0
      %s55 = sshll.u32 [#allocation2], 4
      %s56 = int_to_ptr.vmem [resolvable:$true] %s55
      %s57 = sshll.u32 %s3, 4
      %s58 = int_to_ptr.hbm [resolvable:$true] %s57
      %60 = dma.vmem_to_hbm [thread:$0]  %s56, 128, %s58, [#allocation3]
    $region17: #{tpu_custom_call.1} parent=1 // pred_fallthru
      _
    // Predicated region
    $region18: #{tpu_custom_call.1} parent=1 // pred_check
      _
    $region19: #{tpu_custom_call.1} parent=1 // pred_check_branch
      %62 = sbr.rel (0) target = $region21
    $region20: #{tpu_custom_call.1} parent=1 // pred_region
      %64 = dma.done [#allocation3], 128
    $region21: #{tpu_custom_call.1} parent=1 // pred_fallthru
      _
    %65 = vsyncpa [#allocation3], 1

</llo_original>
